<compile_context>
chip_gen: v6e
topology: v6e:2x2x1
jax: 0.10.0
libtpu: 0.0.40
codegen_flags: <defaults>
</compile_context>

<pallas_src>
import math
from functools import partial

import jax
import jax.numpy as jnp
from jax import lax
from jax.experimental import pallas as pl
from jax.experimental.pallas import tpu as pltpu


# ----------------------------------------------------------------------------
# helpers
# ----------------------------------------------------------------------------

def _round_up(x, m):
    return ((x + m - 1) // m) * m


def _pad2(x, rows, cols):
    return jnp.pad(x, ((0, rows - x.shape[0]), (0, cols - x.shape[1])))


def _elu(x):
    return jnp.where(x > 0, x, jnp.exp(x) - 1.0)


# Tile caps: 256-multiples keep the 256x256 MXU (v6e/v7x) full and still give
# clean 128-tiles on v5e; per-block VMEM stays ~0.5 MiB so double-buffered
# inputs fit easily inside v7x's smaller (64 MiB physical / 32 MiB scoped) VMEM.
_TM, _TN, _TK = 256, 256, 512


# ----------------------------------------------------------------------------
# Kernel 1: tiled matmul + bias (+ optional fused ELU on the input operand)
# ----------------------------------------------------------------------------

def _mm_bias_kernel(a_ref, w_ref, b_ref, o_ref, acc_ref, *, act_in, nk):
    k = pl.program_id(2)

    @pl.when(k == 0)
    def _():
        acc_ref[...] = jnp.zeros_like(acc_ref)

    a = a_ref[...]
    if act_in:                     # ELU in f32 (exact on zero padding), bf16 for MXU
        a = _elu(a)
    acc_ref[...] += jnp.dot(a.astype(jnp.bfloat16), w_ref[...],
                            preferred_element_type=jnp.float32)

    @pl.when(k == nk - 1)
    def _():
        o_ref[...] = acc_ref[...] + b_ref[...]


def matmul_bias(a, w, b, act_in=False):
    """out = (elu(a) if act_in else a) @ w + b,   a:(M,K) w:(K,N) b:(N,)."""
    M, K = a.shape
    N = w.shape[1]
    tm = min(_TM, _round_up(M, 8))
    tn = min(_TN, _round_up(N, 128))
    tk = min(_TK, _round_up(K, 128))
    Mp, Np, Kp = _round_up(M, tm), _round_up(N, tn), _round_up(K, tk)
    a_p = _pad2(a.astype(jnp.float32), Mp, Kp)
    w_p = _pad2(w.astype(jnp.float32), Kp, Np).astype(jnp.bfloat16)
    b_p = _pad2(b.astype(jnp.float32).reshape(1, N), 1, Np)
    nk = Kp // tk
    out = pl.pallas_call(
        partial(_mm_bias_kernel, act_in=act_in, nk=nk),
        grid=(Mp // tm, Np // tn, nk),
        in_specs=[pl.BlockSpec((tm, tk), lambda i, j, k: (i, k)),
                  pl.BlockSpec((tk, tn), lambda i, j, k: (k, j)),
                  pl.BlockSpec((1, tn), lambda i, j, k: (0, j))],
        out_specs=pl.BlockSpec((tm, tn), lambda i, j, k: (i, j)),
        out_shape=jax.ShapeDtypeStruct((Mp, Np), jnp.float32),
        scratch_shapes=[pltpu.VMEM((tm, tn), jnp.float32)],
        compiler_params=pltpu.CompilerParams(
            dimension_semantics=("parallel", "parallel", "arbitrary")),
    )(a_p, w_p, b_p)
    return out[:M, :N]


# ----------------------------------------------------------------------------
# Kernel 2: tiled matmul with fused ELU(input), GLU gate and residual add
#           out = (elu(a) @ Wa + ba) * sigmoid(elu(a) @ Wb + bb) + x
# ----------------------------------------------------------------------------

def _mm_glu_res_kernel(a_ref, wa_ref, wb_ref, ba_ref, bb_ref, x_ref, o_ref,
                       acc_a, acc_b, *, nk):
    k = pl.program_id(2)

    @pl.when(k == 0)
    def _():
        acc_a[...] = jnp.zeros_like(acc_a)
        acc_b[...] = jnp.zeros_like(acc_b)

    a = _elu(a_ref[...]).astype(jnp.bfloat16)
    acc_a[...] += jnp.dot(a, wa_ref[...], preferred_element_type=jnp.float32)
    acc_b[...] += jnp.dot(a, wb_ref[...], preferred_element_type=jnp.float32)

    @pl.when(k == nk - 1)
    def _():
        ha = acc_a[...] + ba_ref[...]
        hb = acc_b[...] + bb_ref[...]
        gate = pl.reciprocal(1.0 + jnp.exp(-hb), approx=True)   # sigmoid on EUP
        o_ref[...] = ha * gate + x_ref[...]


def matmul_glu_res(a, wa, wb, ba, bb, x):
    M, K = a.shape
    C = wa.shape[1]
    tm = min(_TM, _round_up(M, 8))
    tn = min(_TN, _round_up(C, 128))
    tk = min(_TK, _round_up(K, 128))
    Mp, Cp, Kp = _round_up(M, tm), _round_up(C, tn), _round_up(K, tk)
    a_p = _pad2(a.astype(jnp.float32), Mp, Kp)
    wa_p = _pad2(wa.astype(jnp.float32), Kp, Cp).astype(jnp.bfloat16)
    wb_p = _pad2(wb.astype(jnp.float32), Kp, Cp).astype(jnp.bfloat16)
    ba_p = _pad2(ba.astype(jnp.float32).reshape(1, C), 1, Cp)
    bb_p = _pad2(bb.astype(jnp.float32).reshape(1, C), 1, Cp)
    x_p = _pad2(x.astype(jnp.float32), Mp, Cp)
    nk = Kp // tk
    out = pl.pallas_call(
        partial(_mm_glu_res_kernel, nk=nk),
        grid=(Mp // tm, Cp // tn, nk),
        in_specs=[pl.BlockSpec((tm, tk), lambda i, j, k: (i, k)),
                  pl.BlockSpec((tk, tn), lambda i, j, k: (k, j)),
                  pl.BlockSpec((tk, tn), lambda i, j, k: (k, j)),
                  pl.BlockSpec((1, tn), lambda i, j, k: (0, j)),
                  pl.BlockSpec((1, tn), lambda i, j, k: (0, j)),
                  pl.BlockSpec((tm, tn), lambda i, j, k: (i, j))],
        out_specs=pl.BlockSpec((tm, tn), lambda i, j, k: (i, j)),
        out_shape=jax.ShapeDtypeStruct((Mp, Cp), jnp.float32),
        scratch_shapes=[pltpu.VMEM((tm, tn), jnp.float32),
                        pltpu.VMEM((tm, tn), jnp.float32)],
        compiler_params=pltpu.CompilerParams(
            dimension_semantics=("parallel", "parallel", "arbitrary")),
    )(a_p, wa_p, wb_p, ba_p, bb_p, x_p)
    return out[:M, :C]


# ----------------------------------------------------------------------------
# Kernel 3: flash-style causal attention (online softmax, in-kernel masks)
# ----------------------------------------------------------------------------

def _flash_attn_kernel(q_ref, k_ref, v_ref, o_ref, m_sc, l_sc, acc_sc,
                       *, scale, s_valid, tq, tk, nk):
    qi = pl.program_id(1)
    ki = pl.program_id(2)

    @pl.when(ki == 0)
    def _():
        m_sc[...] = jnp.full_like(m_sc, -1e30)
        l_sc[...] = jnp.zeros_like(l_sc)
        acc_sc[...] = jnp.zeros_like(acc_sc)

    q = q_ref[0].astype(jnp.bfloat16)
    kk = k_ref[0].astype(jnp.bfloat16)
    s = lax.dot_general(q, kk, (((1,), (1,)), ((), ())),
                        preferred_element_type=jnp.float32) * scale

    # causal + sequence-length mask generated in-kernel (no (S,S) HBM mask DMA)
    q_idx = qi * tq + lax.broadcasted_iota(jnp.int32, (tq, tk), 0)
    k_idx = ki * tk + lax.broadcasted_iota(jnp.int32, (tq, tk), 1)
    visible = (k_idx < q_idx) & (k_idx < s_valid)
    s = jnp.where(visible, s, jnp.float32(-10000.0))   # match PyTorch masked_fill

    m_prev = m_sc[...]
    m_new = jnp.maximum(m_prev, jnp.max(s, axis=-1, keepdims=True))
    alpha = jnp.exp(m_prev - m_new)
    p = jnp.exp(s - m_new)
    l_sc[...] = alpha * l_sc[...] + jnp.sum(p, axis=-1, keepdims=True)
    acc_sc[...] = alpha * acc_sc[...] + jnp.dot(
        p.astype(jnp.bfloat16), v_ref[0].astype(jnp.bfloat16),
        preferred_element_type=jnp.float32)
    m_sc[...] = m_new

    @pl.when(ki == nk - 1)
    def _():
        start = (q_idx[:, :1] > 0).astype(jnp.float32)   # query 0 attends to nothing
        o_ref[0] = acc_sc[...] * pl.reciprocal(l_sc[...], approx=True) * start


def flash_attention(q, k, v, dim_head, s_valid):
    """q, k, v: (B*n_head, S, Dp) with Dp a multiple of 128; returns (BH, Sp, Dp)."""
    BH, S, Dp = q.shape
    t = min(256, _round_up(S, 8))
    Sp = _round_up(S, t)
    if Sp != S:
        padw = ((0, 0), (0, Sp - S), (0, 0))
        q, k, v = jnp.pad(q, padw), jnp.pad(k, padw), jnp.pad(v, padw)
    nk = Sp // t
    scale = 1.0 / math.sqrt(dim_head)
    return pl.pallas_call(
        partial(_flash_attn_kernel, scale=scale, s_valid=s_valid, tq=t, tk=t, nk=nk),
        grid=(BH, Sp // t, nk),
        in_specs=[pl.BlockSpec((1, t, Dp), lambda h, i, j: (h, i, 0)),
                  pl.BlockSpec((1, t, Dp), lambda h, i, j: (h, j, 0)),
                  pl.BlockSpec((1, t, Dp), lambda h, i, j: (h, j, 0))],
        out_specs=pl.BlockSpec((1, t, Dp), lambda h, i, j: (h, i, 0)),
        out_shape=jax.ShapeDtypeStruct((BH, Sp, Dp), jnp.float32),
        scratch_shapes=[pltpu.VMEM((t, 1), jnp.float32),
                        pltpu.VMEM((t, 1), jnp.float32),
                        pltpu.VMEM((t, Dp), jnp.float32)],
        compiler_params=pltpu.CompilerParams(
            dimension_semantics=("parallel", "parallel", "arbitrary")),
    )(q, k, v)


# ----------------------------------------------------------------------------
# Glue: weight-norm, im2col conv, reshapes
# ----------------------------------------------------------------------------

def wn_conv_weight(v, g, causal=0):
    if causal > 0:  # CausalConv2d(padding='causal') zeroes weight_v in forward
        v = v.at[:, :, -1, causal:].set(0.0)
    norm = jnp.sqrt(jnp.sum(v * v, axis=(1, 2, 3), keepdims=True))
    return g * v / norm


def wn_linear_weight(v, g):
    norm = jnp.sqrt(jnp.sum(v * v, axis=1, keepdims=True))
    return g * v / norm


def nchw_to_rows(x):
    B, C, H, W = x.shape
    return x.transpose(0, 2, 3, 1).reshape(B * H * W, C)


def rows_to_nchw(r, B, H, W):
    C = r.shape[1]
    return r.reshape(B, H, W, C).transpose(0, 3, 1, 2)


def _im2col(x, kh, kw, pad):
    """(B,Cin,H,W) -> (B*Ho*Wo, kh*kw*Cin); column order (kh, kw, cin)."""
    B, Cin, H, W = x.shape
    xp = jnp.pad(x, ((0, 0), (0, 0), (pad[0], pad[1]), (pad[2], pad[3])))
    Ho = xp.shape[2] - kh + 1
    Wo = xp.shape[3] - kw + 1
    xh = jnp.transpose(xp, (0, 2, 3, 1))              # NHWC: channels on lanes
    cols = [xh[:, i:i + Ho, j:j + Wo, :] for i in range(kh) for j in range(kw)]
    A = jnp.concatenate(cols, axis=-1).reshape(B * Ho * Wo, kh * kw * Cin)
    return A, Ho, Wo


def conv2d(x, v, g, b, pad=(0, 0, 0, 0), causal=0, act_in=False):
    """Weight-normed Conv2d (NCHW) via im2col + tiled Pallas matmul.
    pad = (top, bottom, left, right)."""
    w = wn_conv_weight(v, g, causal)
    B, Cin, H, W = x.shape
    Cout, _, kh, kw = w.shape
    if kh == 1 and kw == 1 and tuple(pad) == (0, 0, 0, 0):
        out = matmul_bias(nchw_to_rows(x), w.reshape(Cout, Cin).T, b, act_in=act_in)
        return rows_to_nchw(out, B, H, W)
    # TODO(synk): im2col is still materialized in glue; an in-kernel windowed
    # kernel-position reduction axis would cut input HBM traffic further.
    A, Ho, Wo = _im2col(x, kh, kw, pad)
    Wm = jnp.transpose(w, (2, 3, 1, 0)).reshape(kh * kw * Cin, Cout)
    out = matmul_bias(A, Wm, b, act_in=act_in)
    return rows_to_nchw(out, B, Ho, Wo)


def conv2d_glu_res(x_in, residual, v, g, b, pad=(0, 0, 0, 0), causal=0):
    """GLU(conv(ELU(x_in))) + residual, fully fused into one tiled matmul."""
    w = wn_conv_weight(v, g, causal)
    B, Cin, H, W = x_in.shape
    C2, _, kh, kw = w.shape
    C = C2 // 2
    if kh == 1 and kw == 1 and tuple(pad) == (0, 0, 0, 0):
        A, Ho, Wo = nchw_to_rows(x_in), H, W
        Wm = w.reshape(C2, Cin).T
    else:
        A, Ho, Wo = _im2col(x_in, kh, kw, pad)
        Wm = jnp.transpose(w, (2, 3, 1, 0)).reshape(kh * kw * Cin, C2)
    out = matmul_glu_res(A, Wm[:, :C], Wm[:, C:], b[:C], b[C:],
                         nchw_to_rows(residual))
    return rows_to_nchw(out, B, Ho, Wo)


def shift_down(x):
    return jnp.pad(x, ((0, 0), (0, 0), (1, 0), (0, 0)))[:, :, :x.shape[2], :]


def shift_right(x):
    return jnp.pad(x, ((0, 0), (0, 0), (0, 0), (1, 0)))[:, :, :, :x.shape[3]]


def make_background(B, H, W):
    cx = (jnp.arange(H, dtype=jnp.float32) - H / 2) / H
    cx = jnp.broadcast_to(cx.reshape(1, 1, H, 1), (1, 1, H, W))
    cy = (jnp.arange(W, dtype=jnp.float32) - W / 2) / W
    cy = jnp.broadcast_to(cy.reshape(1, 1, 1, W), (1, 1, H, W))
    bg = jnp.concatenate([cx, cy], axis=1)
    return jnp.broadcast_to(bg, (B, 2, H, W))


# ----------------------------------------------------------------------------
# Modules (functional)
# ----------------------------------------------------------------------------

def gated_resblock(prm, x, aux=None):
    B, _, H, W = x.shape
    c1 = prm['conv1']
    if (aux is not None and c1['v'].shape[2] == 1 and c1['v'].shape[3] == 1
            and tuple(c1['pad']) == (0, 0, 0, 0)):
        # fuse conv1 + aux_conv (both 1x1) into a single matmul over concatenated channels
        a1 = prm['aux_conv']
        w1 = wn_conv_weight(c1['v'], c1['g'], c1['causal'])
        w2 = wn_conv_weight(a1['v'], a1['g'], a1['causal'])
        ch = w1.shape[0]
        A = jnp.concatenate([nchw_to_rows(x), nchw_to_rows(aux)], axis=1)
        Wm = jnp.concatenate([w1.reshape(ch, -1).T, w2.reshape(ch, -1).T], axis=0)
        h = rows_to_nchw(matmul_bias(A, Wm, c1['b'] + a1['b'], act_in=True), B, H, W)
    else:
        h = conv2d(x, **c1, act_in=True)
        if aux is not None:
            h = h + conv2d(aux, **prm['aux_conv'], act_in=True)
    # dropout: identity (eval mode)
    # conv2 + GLU gate + residual fused in one kernel
    return conv2d_glu_res(h, x, **prm['conv2'])


def causal_attention_apply(prm, query, key, n_head=8):
    B, _, H, W = query.shape
    S = H * W
    ch = prm['q_v'].shape[0]
    dim_head = ch // n_head

    qw = wn_linear_weight(prm['q_v'], prm['q_g'])
    kw = wn_linear_weight(prm['k_v'], prm['k_g'])
    vw = wn_linear_weight(prm['v_v'], prm['v_g'])

    qf = nchw_to_rows(query)                              # (B*S, qc)
    kf = nchw_to_rows(key)                                # (B*S, kc)
    q = matmul_bias(qf, qw.T, prm['q_b'])
    # fused key/value projection (shared input rows, single launch)
    kv = matmul_bias(kf, jnp.concatenate([kw.T, vw.T], axis=1),
                     jnp.concatenate([prm['k_b'], prm['v_b']]))
    k, v = kv[:, :ch], kv[:, ch:]

    Dp = _round_up(max(dim_head, 1), 128)                 # lane-dense head dim

    def split_heads(t):
        t = (t.reshape(B, S, n_head, dim_head)
              .transpose(0, 2, 1, 3)
              .reshape(B * n_head, S, dim_head))
        return jnp.pad(t, ((0, 0), (0, 0), (0, Dp - dim_head)))

    out = flash_attention(split_heads(q), split_heads(k), split_heads(v),
                          dim_head, S)[:, :S, :dim_head]
    # attention dropout: identity (eval mode)
    out = (out.reshape(B, n_head, S, dim_head)
              .transpose(0, 2, 1, 3)
              .reshape(B, H, W, n_head * dim_head)
              .transpose(0, 3, 1, 2))
    return out


def pixel_block(prm, x, background):
    out = x
    for rp in prm['resblocks']:
        out = gated_resblock(rp, out)
    key_cat = jnp.concatenate([x, out, background], axis=1)
    key = gated_resblock(prm['key_resblock'], key_cat)
    query_cat = jnp.concatenate([out, background], axis=1)
    query = gated_resblock(prm['query_resblock'], query_cat)
    attn_out = causal_attention_apply(prm['attn'], query, key, n_head=8)
    out = gated_resblock(prm['out_resblock'], out, aux=attn_out)
    return out


def pixelsnail_forward(params, tokens, n_class):
    B, H, W = tokens.shape
    x = jax.nn.one_hot(tokens, n_class, dtype=jnp.float32).transpose(0, 3, 1, 2)
    horizontal = shift_down(conv2d(x, **params['horizontal']))
    vertical = shift_right(conv2d(x, **params['vertical']))
    out = horizontal + vertical
    background = make_background(B, H, W)
    # condition / cond_resnet path unused (n_cond_res_block = 0, condition=None)
    for bp in params['blocks']:
        out = pixel_block(bp, out, background)
    out = conv2d(out, **params['out'], act_in=True)   # Sequential(ELU, WNConv2d(channel, n_class, 1))
    return out, {}, None


# ----------------------------------------------------------------------------
# Deterministic parameter initialization (shapes from the PyTorch __init__)
# ----------------------------------------------------------------------------

def _init_conv(key, cout, cin, kh, kw, pad=(0, 0, 0, 0), causal=0):
    k1, k2, k3 = jax.random.split(key, 3)
    return dict(
        v=0.1 * jax.random.normal(k1, (cout, cin, kh, kw), jnp.float32),
        g=1.0 + 0.1 * jax.random.normal(k2, (cout, 1, 1, 1), jnp.float32),
        b=0.1 * jax.random.normal(k3, (cout,), jnp.float32),
        pad=pad, causal=causal)


def _init_linear(key, cout, cin):
    k1, k2, k3 = jax.random.split(key, 3)
    v = 0.1 * jax.random.normal(k1, (cout, cin), jnp.float32)
    g = 1.0 + 0.1 * jax.random.normal(k2, (cout, 1), jnp.float32)
    b = 0.1 * jax.random.normal(k3, (cout,), jnp.float32)
    return v, g, b


def init_gated_resblock(key, in_ch, ch, ksz, conv='wnconv2d', aux_ch=0):
    keys = jax.random.split(key, 3)
    if conv == 'wnconv2d':
        p = ksz // 2
        pad, causal = (p, p, p, p), 0
    elif conv == 'causal':
        pad, causal = (ksz - 1, 0, ksz // 2, ksz // 2), ksz // 2
    else:
        raise ValueError(conv)
    prm = {'conv1': _init_conv(keys[0], ch, in_ch, ksz, ksz, pad=pad, causal=causal),
           'conv2': _init_conv(keys[1], in_ch * 2, ch, ksz, ksz, pad=pad, causal=causal)}
    if aux_ch > 0:
        prm['aux_conv'] = _init_conv(keys[2], ch, aux_ch, 1, 1)
    return prm


def init_attention(key, query_ch, key_ch, ch):
    k1, k2, k3 = jax.random.split(key, 3)
    qv, qg, qb = _init_linear(k1, ch, query_ch)
    kv, kg, kb = _init_linear(k2, ch, key_ch)
    vv, vg, vb = _init_linear(k3, ch, key_ch)
    return dict(q_v=qv, q_g=qg, q_b=qb, k_v=kv, k_g=kg, k_b=kb, v_v=vv, v_g=vg, v_b=vb)


def init_pixel_block(key, in_ch, res_ch, ksz, n_res_block):
    keys = jax.random.split(key, n_res_block + 4)
    prm = {'resblocks': [init_gated_resblock(keys[i], in_ch, res_ch, ksz, conv='causal')
                         for i in range(n_res_block)]}
    prm['key_resblock'] = init_gated_resblock(keys[n_res_block], in_ch * 2 + 2, in_ch, 1)
    prm['query_resblock'] = init_gated_resblock(keys[n_res_block + 1], in_ch + 2, in_ch, 1)
    prm['attn'] = init_attention(keys[n_res_block + 2], in_ch + 2, in_ch * 2 + 2, in_ch // 2)
    prm['out_resblock'] = init_gated_resblock(keys[n_res_block + 3], in_ch, in_ch, 1,
                                              aux_ch=in_ch // 2)
    return prm


def init_pixelsnail(key, n_class, channel, kernel_size, n_block, n_res_block, res_ch):
    kernel = kernel_size + 1 if kernel_size % 2 == 0 else kernel_size
    keys = jax.random.split(key, n_block + 3)
    params = {}
    kh, kw = kernel // 2, kernel            # horizontal: padding='down'
    params['horizontal'] = _init_conv(keys[0], channel, n_class, kh, kw,
                                      pad=(kh - 1, 0, kw // 2, kw // 2))
    kh2, kw2 = (kernel + 1) // 2, kernel // 2   # vertical: padding='downright'
    params['vertical'] = _init_conv(keys[1], channel, n_class, kh2, kw2,
                                    pad=(kh2 - 1, 0, kw2 - 1, 0))
    params['blocks'] = [init_pixel_block(keys[2 + i], channel, res_ch, kernel_size, n_res_block)
                        for i in range(n_block)]
    params['out'] = _init_conv(keys[2 + n_block], n_class, channel, 1, 1)
    return params


# ----------------------------------------------------------------------------
if __name__ == "__main__":
    key = jax.random.PRNGKey(0)
    B, H, W = 2, 8, 8
    n_class, channel, kernel_size = 4, 32, 3
    n_block, n_res_block, res_channel = 1, 1, 32

    pkey, dkey = jax.random.split(key)
    params = init_pixelsnail(pkey, n_class, channel, kernel_size,
                             n_block, n_res_block, res_channel)
    tokens = jax.random.randint(dkey, (B, H, W), 0, n_class, dtype=jnp.int32)

    out, cache, _ = pixelsnail_forward(params, tokens, n_class)
    out = jax.block_until_ready(out)

    assert out.shape == (B, n_class, H, W), out.shape
    assert bool(jnp.all(jnp.isfinite(out)))
    print("KERNEL_OK")
</pallas_src>

<mosaic_0001>
module attributes {stable_mosaic.version = 11 : i64} {
  func.func @_mm_bias_kernel(%arg0: i32, %arg1: i32, %arg2: i32, %arg3: memref<128x128xf32, #tpu.memory_space<vmem>>, %arg4: memref<128x128xbf16, #tpu.memory_space<vmem>>, %arg5: memref<1x128xf32, #tpu.memory_space<vmem>>, %arg6: memref<128x128xf32, #tpu.memory_space<vmem>>, %arg7: memref<128x128xf32, #tpu.memory_space<vmem>>) attributes {dimension_semantics = [#tpu.dimension_semantics<parallel>, #tpu.dimension_semantics<parallel>, #tpu.dimension_semantics<arbitrary>], iteration_bounds = array<i64: 1, 1, 1>, scalar_prefetch = 0 : i64, scratch_operands = 1 : i64, tpu.core_type = #tpu.core_type<tc>, window_params = [{transform_indices = @transform_0, window_bounds = array<i64: 128, 128>}, {transform_indices = @transform_1, window_bounds = array<i64: 128, 128>}, {transform_indices = @transform_2, window_bounds = array<i64: 1, 128>}, {transform_indices = @transform_3, window_bounds = array<i64: 128, 128>}]} {
    %c0_i32 = arith.constant 0 : i32
    %0 = arith.cmpi eq, %arg2, %c0_i32 : i32
    %1 = arith.extui %0 : i1 to i32
    %c0_i32_0 = arith.constant 0 : i32
    %2 = arith.cmpi ne, %1, %c0_i32_0 : i32
    scf.if %2 {
      %cst_10 = arith.constant 0.000000e+00 : f32
      %13 = vector.broadcast %cst_10 : f32 to vector<128x128xf32>
      %c0_11 = arith.constant 0 : index
      %c0_12 = arith.constant 0 : index
      %14 = vector.load %arg7[%c0_11, %c0_12] : memref<128x128xf32, #tpu.memory_space<vmem>>, vector<128x128xf32>
      tpu.vector_store %arg7[%c0_11, %c0_12], %13 {strides = array<i32>} : memref<128x128xf32, #tpu.memory_space<vmem>>, vector<128x128xf32>,
    } else {
    }
    %c0 = arith.constant 0 : index
    %c0_1 = arith.constant 0 : index
    %3 = vector.load %arg3[%c0, %c0_1] : memref<128x128xf32, #tpu.memory_space<vmem>>, vector<128x128xf32>
    %c0_2 = arith.constant 0 : index
    %c0_3 = arith.constant 0 : index
    %4 = vector.load %arg7[%c0_2, %c0_3] : memref<128x128xf32, #tpu.memory_space<vmem>>, vector<128x128xf32>
    %5 = arith.truncf %3 : vector<128x128xf32> to vector<128x128xbf16>
    %c0_4 = arith.constant 0 : index
    %c0_5 = arith.constant 0 : index
    %6 = vector.load %arg4[%c0_4, %c0_5] : memref<128x128xbf16, #tpu.memory_space<vmem>>, vector<128x128xbf16>
    %cst = arith.constant dense<0.000000e+00> : vector<128x128xf32>
    %7 = tpu.matmul %5, %6, %cst {dimension_numbers = #tpu.dot_dimension_numbers<[1], [0], [0], [1], [0, 0, 1, 1], [], []>} : vector<128x128xbf16>, vector<128x128xbf16>, vector<128x128xf32> -> vector<128x128xf32>
    %8 = arith.addf %4, %7 : vector<128x128xf32>
    %c0_6 = arith.constant 0 : index
    %c0_7 = arith.constant 0 : index
    %9 = vector.load %arg7[%c0_6, %c0_7] : memref<128x128xf32, #tpu.memory_space<vmem>>, vector<128x128xf32>
    tpu.vector_store %arg7[%c0_6, %c0_7], %8 {strides = array<i32>} : memref<128x128xf32, #tpu.memory_space<vmem>>, vector<128x128xf32>,
    %c0_i32_8 = arith.constant 0 : i32
    %10 = arith.cmpi eq, %arg2, %c0_i32_8 : i32
    %11 = arith.extui %10 : i1 to i32
    %c0_i32_9 = arith.constant 0 : i32
    %12 = arith.cmpi ne, %11, %c0_i32_9 : i32
    scf.if %12 {
      %c0_10 = arith.constant 0 : index
      %c0_11 = arith.constant 0 : index
      %13 = vector.load %arg7[%c0_10, %c0_11] : memref<128x128xf32, #tpu.memory_space<vmem>>, vector<128x128xf32>
      %c0_12 = arith.constant 0 : index
      %c0_13 = arith.constant 0 : index
      %14 = vector.load %arg5[%c0_12, %c0_13] : memref<1x128xf32, #tpu.memory_space<vmem>>, vector<1x128xf32>
      %15 = vector.broadcast %14 : vector<1x128xf32> to vector<128x128xf32>
      %16 = arith.addf %13, %15 : vector<128x128xf32>
      %c0_14 = arith.constant 0 : index
      %c0_15 = arith.constant 0 : index
      %17 = vector.load %arg6[%c0_14, %c0_15] : memref<128x128xf32, #tpu.memory_space<vmem>>, vector<128x128xf32>
      tpu.vector_store %arg6[%c0_14, %c0_15], %16 {strides = array<i32>} : memref<128x128xf32, #tpu.memory_space<vmem>>, vector<128x128xf32>,
    } else {
    }
    return
  }
  func.func @transform_0(%arg0: i32, %arg1: i32, %arg2: i32) -> (i32, i32) {
    %c0_i32 = arith.constant 0 : i32
    return %arg0, %arg2 : i32, i32
  }
  func.func @transform_1(%arg0: i32, %arg1: i32, %arg2: i32) -> (i32, i32) {
    %c0_i32 = arith.constant 0 : i32
    return %arg2, %arg1 : i32, i32
  }
  func.func @transform_2(%arg0: i32, %arg1: i32, %arg2: i32) -> (i32, i32) {
    %c0_i32 = arith.constant 0 : i32
    %c0_i32_0 = arith.constant 0 : i32
    return %c0_i32, %arg1 : i32, i32
  }
  func.func @transform_3(%arg0: i32, %arg1: i32, %arg2: i32) -> (i32, i32) {
    %c0_i32 = arith.constant 0 : i32
    return %arg0, %arg1 : i32, i32
  }
}

</mosaic_0001>

<llo_original>
// kernel: tpu_custom_call.1
$region0: #{tpu_custom_call.1}
  #allocation0 [shape = 'u32[]', space=smem, size = 0x4, offset = 0x4, fixed_abs, tag = 'smem constant byte address 0x4 - core index']
  #allocation1 [shape = 'u32[144,128]{1,0:T(1,128)}', space=vmem, size = 0x12000, scoped, tag = 'internal scratch']
  #allocation2 [shape = 'f32[128,128]{1,0:T(8,128)}', space=vmem, size = 0x10000, scoped, tag = 'scratch operand']
  %s0 = inlined_call_operand.hbm [shape: f32[128,128], index: 0, kind: input, shape index: {}]
  %s1 = inlined_call_operand.hbm [shape: bf16[128,128], index: 1, kind: input, shape index: {}]
  %s2 = inlined_call_operand.vmem [shape: f32[1,128], index: 2, kind: input, shape index: {}]
  %s3 = inlined_call_operand.hbm [shape: f32[128,128], index: 3, kind: output, shape index: {}]
  %s4 = sld [smem:[#allocation0]]
  $region38: #{tpu_custom_call.1} parent=0
    _
  %s6 = ssub.s32 1, %s4
  %s7 = scalar_select 0, %s6, %s4
  $region1: #{tpu_custom_call.1} parent=0
    #allocation3 [shape = 'u8[65536]{0}', space=vmem, size = 0x10000, scoped, tag = 'input window, operand 0, single buffered']
    #allocation4 [shape = 's32[1]{0}', space=sflag, size = 0x4, scoped, tag = 'scoped memory for tpu_custom_call.1']
    #allocation5 [shape = 's32[1]{0}', space=sflag, size = 0x4, scoped, tag = 'scoped memory for tpu_custom_call.1']
    #allocation6 [shape = 'u8[32768]{0}', space=vmem, size = 0x8000, scoped, tag = 'input window, operand 1, single buffered']
    #allocation7 [shape = 's32[1]{0}', space=sflag, size = 0x4, scoped, tag = 'scoped memory for tpu_custom_call.1']
    #allocation8 [shape = 'u8[65536]{0}', space=vmem, size = 0x10000, scoped, tag = 'output window, operand 0, single buffered']
    %8 = vsyncpa [#allocation4], 0
    %9 = vsyncpa [#allocation7], 0
    %10 = vsyncpa [#allocation5], 0
    // Predicated region
    $region2: #{tpu_custom_call.1} parent=1 // pred_check
      _
    $region3: #{tpu_custom_call.1} parent=1 // pred_check_branch
      %12 = sbr.rel (0) target = $region5
    $region4: #{tpu_custom_call.1} parent=1 // pred_region
      %s14 = ssub.s32 2048, 2048
      %15 = vsyncadd [#allocation4], %s14
      %s16 = sshll.u32 [#allocation3], 4
      %s17 = int_to_ptr.vmem [resolvable:$true] %s16
      %22 = dma.hbm_to_vmem [thread:$0]  %s0, 2048, %s17, [#allocation4], 128, 128, 8
    $region5: #{tpu_custom_call.1} parent=1 // pred_fallthru
      _
    // Predicated region
    $region6: #{tpu_custom_call.1} parent=1 // pred_check
      _
    $region7: #{tpu_custom_call.1} parent=1 // pred_check_branch
      %24 = sbr.rel (0) target = $region9
    $region8: #{tpu_custom_call.1} parent=1 // pred_region
      %s26 = ssub.s32 1024, 1024
      %27 = vsyncadd [#allocation7], %s26
      %s28 = sshll.u32 [#allocation6], 4
      %s29 = int_to_ptr.vmem [resolvable:$true] %s28
      %34 = dma.hbm_to_vmem [thread:$0]  %s1, 1024, %s29, [#allocation7], 64, 64, 4
    $region9: #{tpu_custom_call.1} parent=1 // pred_fallthru
      _
    // Predicated region
    $region10: #{tpu_custom_call.1} parent=1 // pred_check
      _
    $region11: #{tpu_custom_call.1} parent=1 // pred_check_branch
      %36 = sbr.rel (0) target = $region13
    $region12: #{tpu_custom_call.1} parent=1 // pred_region
      _
    $region13: #{tpu_custom_call.1} parent=1 // pred_fallthru
      _
    // Predicated region
    $region14: #{tpu_custom_call.1} parent=1 // pred_check
      _
    $region15: #{tpu_custom_call.1} parent=1 // pred_check_branch
      %38 = sbr.rel (0) target = $region17
    $region16: #{tpu_custom_call.1} parent=1 // pred_region
      %39 = dma.done [#allocation4], 2048
    $region17: #{tpu_custom_call.1} parent=1 // pred_fallthru
      _
    // Predicated region
    $region18: #{tpu_custom_call.1} parent=1 // pred_check
      _
    $region19: #{tpu_custom_call.1} parent=1 // pred_check_branch
      %41 = sbr.rel (0) target = $region21
    $region20: #{tpu_custom_call.1} parent=1 // pred_region
      %42 = dma.done [#allocation7], 1024
    $region21: #{tpu_custom_call.1} parent=1 // pred_fallthru
      _
    %p44 = scmp.eq.s32.totalorder 0, 0
    // Predicated region
    $region22: #{tpu_custom_call.1} parent=1 // pred_check
      %p45 = pneg %p44
    $region23: #{tpu_custom_call.1} parent=1 // pred_check_branch
      %47 = sbr.rel (%p45) target = $region25
    $region24: #{tpu_custom_call.1} parent=1 // pred_region
      %48 = vst [vmem:[#allocation2] sm:$0xff] 0.0
      %49 = vst [vmem:[#allocation2 + $0x8] sm:$0xff] 0.0
      %50 = vst [vmem:[#allocation2 + $0x10] sm:$0xff] 0.0
      %51 = vst [vmem:[#allocation2 + $0x18] sm:$0xff] 0.0
      %52 = vst [vmem:[#allocation2 + $0x20] sm:$0xff] 0.0
      %53 = vst [vmem:[#allocation2 + $0x28] sm:$0xff] 0.0
      %54 = vst [vmem:[#allocation2 + $0x30] sm:$0xff] 0.0
      %55 = vst [vmem:[#allocation2 + $0x38] sm:$0xff] 0.0
      %56 = vst [vmem:[#allocation2 + $0x40] sm:$0xff] 0.0
      %57 = vst [vmem:[#allocation2 + $0x48] sm:$0xff] 0.0
      %58 = vst [vmem:[#allocation2 + $0x50] sm:$0xff] 0.0
      %59 = vst [vmem:[#allocation2 + $0x58] sm:$0xff] 0.0
      %60 = vst [vmem:[#allocation2 + $0x60] sm:$0xff] 0.0
      %61 = vst [vmem:[#allocation2 + $0x68] sm:$0xff] 0.0
      %62 = vst [vmem:[#allocation2 + $0x70] sm:$0xff] 0.0
      %63 = vst [vmem:[#allocation2 + $0x78] sm:$0xff] 0.0
    $region25: #{tpu_custom_call.1} parent=1 // pred_fallthru
      _
    %v64 = vld [vmem:[#allocation3] sm:$0xff]
    %v65 = vld [vmem:[#allocation3 + $0x8] sm:$0xff]
    %v66 = vld [vmem:[#allocation3 + $0x10] sm:$0xff]
    %v67 = vld [vmem:[#allocation3 + $0x18] sm:$0xff]
    %v68 = vld [vmem:[#allocation3 + $0x20] sm:$0xff]
    %v69 = vld [vmem:[#allocation3 + $0x28] sm:$0xff]
    %v70 = vld [vmem:[#allocation3 + $0x30] sm:$0xff]
    %v71 = vld [vmem:[#allocation3 + $0x38] sm:$0xff]
    %v72 = vld [vmem:[#allocation3 + $0x40] sm:$0xff]
    %v73 = vld [vmem:[#allocation3 + $0x48] sm:$0xff]
    %v74 = vld [vmem:[#allocation3 + $0x50] sm:$0xff]
    %v75 = vld [vmem:[#allocation3 + $0x58] sm:$0xff]
    %v76 = vld [vmem:[#allocation3 + $0x60] sm:$0xff]
    %v77 = vld [vmem:[#allocation3 + $0x68] sm:$0xff]
    %v78 = vld [vmem:[#allocation3 + $0x70] sm:$0xff]
    %v79 = vld [vmem:[#allocation3 + $0x78] sm:$0xff]
    %v80 = vld [vmem:[#allocation2] sm:$0xff]
    %v81 = vld [vmem:[#allocation2 + $0x8] sm:$0xff]
    %v82 = vld [vmem:[#allocation2 + $0x10] sm:$0xff]
    %v83 = vld [vmem:[#allocation2 + $0x18] sm:$0xff]
    %v84 = vld [vmem:[#allocation2 + $0x20] sm:$0xff]
    %v85 = vld [vmem:[#allocation2 + $0x28] sm:$0xff]
    %v86 = vld [vmem:[#allocation2 + $0x30] sm:$0xff]
    %v87 = vld [vmem:[#allocation2 + $0x38] sm:$0xff]
    %v88 = vld [vmem:[#allocation2 + $0x40] sm:$0xff]
    %v89 = vld [vmem:[#allocation2 + $0x48] sm:$0xff]
    %v90 = vld [vmem:[#allocation2 + $0x50] sm:$0xff]
    %v91 = vld [vmem:[#allocation2 + $0x58] sm:$0xff]
    %v92 = vld [vmem:[#allocation2 + $0x60] sm:$0xff]
    %v93 = vld [vmem:[#allocation2 + $0x68] sm:$0xff]
    %v94 = vld [vmem:[#allocation2 + $0x70] sm:$0xff]
    %v95 = vld [vmem:[#allocation2 + $0x78] sm:$0xff]
    %v96 = vpack.c.bf16 %v65, %v64
    %v97 = vpack.c.bf16 %v67, %v66
    %v98 = vpack.c.bf16 %v69, %v68
    %v99 = vpack.c.bf16 %v71, %v70
    %v100 = vpack.c.bf16 %v73, %v72
    %v101 = vpack.c.bf16 %v75, %v74
    %v102 = vpack.c.bf16 %v77, %v76
    %v103 = vpack.c.bf16 %v79, %v78
    %v104 = vld [vmem:[#allocation6] sm:$0xf]
    %v105 = vld [vmem:[#allocation6 + $0x4] sm:$0xf]
    %v106 = vld [vmem:[#allocation6 + $0x8] sm:$0xf]
    %v107 = vld [vmem:[#allocation6 + $0xc] sm:$0xf]
    %v108 = vld [vmem:[#allocation6 + $0x10] sm:$0xf]
    %v109 = vld [vmem:[#allocation6 + $0x14] sm:$0xf]
    %v110 = vld [vmem:[#allocation6 + $0x18] sm:$0xf]
    %v111 = vld [vmem:[#allocation6 + $0x1c] sm:$0xf]
    %v112 = vld [vmem:[#allocation6 + $0x20] sm:$0xf]
    %v113 = vld [vmem:[#allocation6 + $0x24] sm:$0xf]
    %v114 = vld [vmem:[#allocation6 + $0x28] sm:$0xf]
    %v115 = vld [vmem:[#allocation6 + $0x2c] sm:$0xf]
    %v116 = vld [vmem:[#allocation6 + $0x30] sm:$0xf]
    %v117 = vld [vmem:[#allocation6 + $0x34] sm:$0xf]
    %v118 = vld [vmem:[#allocation6 + $0x38] sm:$0xf]
    %v119 = vld [vmem:[#allocation6 + $0x3c] sm:$0xf]
    %v136 = vunpack.c.l.b16 %v104
    %v137 = vunpack.c.l.b16 %v105
    %v138 = vunpack.c.l.b16 %v106
    %v139 = vunpack.c.l.b16 %v107
    %v140 = vunpack.c.l.b16 %v108
    %v141 = vunpack.c.l.b16 %v109
    %v142 = vunpack.c.l.b16 %v110
    %v143 = vunpack.c.l.b16 %v111
    %v144 = vunpack.c.l.b16 %v112
    %v145 = vunpack.c.l.b16 %v113
    %v146 = vunpack.c.l.b16 %v114
    %v147 = vunpack.c.l.b16 %v115
    %v148 = vunpack.c.l.b16 %v116
    %v149 = vunpack.c.l.b16 %v117
    %v150 = vunpack.c.l.b16 %v118
    %v151 = vunpack.c.l.b16 %v119
    %v152 = vpack.c.b16 %v137, %v136
    %v153 = vpack.c.b16 %v139, %v138
    %v154 = vpack.c.b16 %v141, %v140
    %v155 = vpack.c.b16 %v143, %v142
    %v156 = vpack.c.b16 %v145, %v144
    %v157 = vpack.c.b16 %v147, %v146
    %v158 = vpack.c.b16 %v149, %v148
    %v159 = vpack.c.b16 %v151, %v150
    %168 = vmatprep.subr.bf16.mxu0 0
    %169 = vmatpush1.bf16.msra.mxu0 %v159
    %170 = vmatprep.subr.bf16.mxu0 0
    %171 = vmatpush1.bf16.msra.mxu0 %v158
    %172 = vmatprep.subr.bf16.mxu0 0
    %173 = vmatpush1.bf16.msra.mxu0 %v157
    %174 = vmatprep.subr.bf16.mxu0 0
    %175 = vmatpush1.bf16.msra.mxu0 %v156
    %176 = vmatprep.subr.bf16.mxu0 0
    %177 = vmatpush1.bf16.msra.mxu0 %v155
    %178 = vmatprep.subr.bf16.mxu0 0
    %179 = vmatpush1.bf16.msra.mxu0 %v154
    %180 = vmatprep.subr.bf16.mxu0 0
    %181 = vmatpush1.bf16.msra.mxu0 %v153
    %182 = vmatprep.subr.bf16.mxu0 0
    %183 = vmatpush1.bf16.msra.mxu0 %v152
    %184 = vmatprep.subr.bf16.mxu0 0
    %185 = vmatpush2.bf16.msra.mxu0 0
    %186 = vmatprep.subr.bf16.mxu0 0
    %187 = vmatpush2.bf16.msra.mxu0 0
    %188 = vmatprep.subr.bf16.mxu0 0
    %189 = vmatpush2.bf16.msra.mxu0 0
    %190 = vmatprep.subr.bf16.mxu0 0
    %191 = vmatpush2.bf16.msra.mxu0 0
    %192 = vmatprep.subr.bf16.mxu0 0
    %193 = vmatpush2.bf16.msra.mxu0 0
    %194 = vmatprep.subr.bf16.mxu0 0
    %195 = vmatpush2.bf16.msra.mxu0 0
    %196 = vmatprep.subr.bf16.mxu0 0
    %197 = vmatpush2.bf16.msra.mxu0 0
    %198 = vmatprep.subr.bf16.mxu0 0
    %199 = vmatpush2.bf16.msra.mxu0 0
    %200 = vmatprep.mubr.bf16.mxu0 0
    %201 = vmatmul.mubr.bf16.gmra.mxu0 %v96
    %v202 = vpop.f32.mrf.mxu0
    %v203 = vadd.f32 0.0, %v202
    %v204 = vpop.f32.mrf.mxu0
    %v205 = vpop.f32.mrf.mxu0
    %v206 = vadd.f32 0.0, %v205
    %v207 = vpop.f32.mrf.mxu0
    %208 = vmatprep.mubr.bf16.mxu0 0
    %209 = vmatmul.mubr.bf16.gmra.mxu0 %v97
    %v210 = vpop.f32.mrf.mxu0
    %v211 = vadd.f32 0.0, %v210
    %v212 = vpop.f32.mrf.mxu0
    %v213 = vpop.f32.mrf.mxu0
    %v214 = vadd.f32 0.0, %v213
    %v215 = vpop.f32.mrf.mxu0
    %216 = vmatprep.mubr.bf16.mxu0 0
    %217 = vmatmul.mubr.bf16.gmra.mxu0 %v98
    %v218 = vpop.f32.mrf.mxu0
    %v219 = vadd.f32 0.0, %v218
    %v220 = vpop.f32.mrf.mxu0
    %v221 = vpop.f32.mrf.mxu0
    %v222 = vadd.f32 0.0, %v221
    %v223 = vpop.f32.mrf.mxu0
    %224 = vmatprep.mubr.bf16.mxu0 0
    %225 = vmatmul.mubr.bf16.gmra.mxu0 %v99
    %v226 = vpop.f32.mrf.mxu0
    %v227 = vadd.f32 0.0, %v226
    %v228 = vpop.f32.mrf.mxu0
    %v229 = vpop.f32.mrf.mxu0
    %v230 = vadd.f32 0.0, %v229
    %v231 = vpop.f32.mrf.mxu0
    %232 = vmatprep.mubr.bf16.mxu0 0
    %233 = vmatmul.mubr.bf16.gmra.mxu0 %v100
    %v234 = vpop.f32.mrf.mxu0
    %v235 = vadd.f32 0.0, %v234
    %v236 = vpop.f32.mrf.mxu0
    %v237 = vpop.f32.mrf.mxu0
    %v238 = vadd.f32 0.0, %v237
    %v239 = vpop.f32.mrf.mxu0
    %240 = vmatprep.mubr.bf16.mxu0 0
    %241 = vmatmul.mubr.bf16.gmra.mxu0 %v101
    %v242 = vpop.f32.mrf.mxu0
    %v243 = vadd.f32 0.0, %v242
    %v244 = vpop.f32.mrf.mxu0
    %v245 = vpop.f32.mrf.mxu0
    %v246 = vadd.f32 0.0, %v245
    %v247 = vpop.f32.mrf.mxu0
    %248 = vmatprep.mubr.bf16.mxu0 0
    %249 = vmatmul.mubr.bf16.gmra.mxu0 %v102
    %v250 = vpop.f32.mrf.mxu0
    %v251 = vadd.f32 0.0, %v250
    %v252 = vpop.f32.mrf.mxu0
    %v253 = vpop.f32.mrf.mxu0
    %v254 = vadd.f32 0.0, %v253
    %v255 = vpop.f32.mrf.mxu0
    %256 = vmatprep.mubr.bf16.mxu0 0
    %257 = vmatmul.mubr.bf16.gmra.mxu0 %v103
    %v258 = vpop.f32.mrf.mxu0
    %v259 = vadd.f32 0.0, %v258
    %v260 = vpop.f32.mrf.mxu0
    %v261 = vpop.f32.mrf.mxu0
    %v262 = vadd.f32 0.0, %v261
    %v263 = vpop.f32.mrf.mxu0
    %264 = vdwg.mxu0
    %v265 = vadd.f32 %v80, %v203
    %v266 = vadd.f32 %v81, %v206
    %v267 = vadd.f32 %v82, %v211
    %v268 = vadd.f32 %v83, %v214
    %v269 = vadd.f32 %v84, %v219
    %v270 = vadd.f32 %v85, %v222
    %v271 = vadd.f32 %v86, %v227
    %v272 = vadd.f32 %v87, %v230
    %v273 = vadd.f32 %v88, %v235
    %v274 = vadd.f32 %v89, %v238
    %v275 = vadd.f32 %v90, %v243
    %v276 = vadd.f32 %v91, %v246
    %v277 = vadd.f32 %v92, %v251
    %v278 = vadd.f32 %v93, %v254
    %v279 = vadd.f32 %v94, %v259
    %v280 = vadd.f32 %v95, %v262
    %281 = vst [vmem:[#allocation2] sm:$0xff] %v265
    %282 = vst [vmem:[#allocation2 + $0x8] sm:$0xff] %v266
    %283 = vst [vmem:[#allocation2 + $0x10] sm:$0xff] %v267
    %284 = vst [vmem:[#allocation2 + $0x18] sm:$0xff] %v268
    %285 = vst [vmem:[#allocation2 + $0x20] sm:$0xff] %v269
    %286 = vst [vmem:[#allocation2 + $0x28] sm:$0xff] %v270
    %287 = vst [vmem:[#allocation2 + $0x30] sm:$0xff] %v271
    %288 = vst [vmem:[#allocation2 + $0x38] sm:$0xff] %v272
    %289 = vst [vmem:[#allocation2 + $0x40] sm:$0xff] %v273
    %290 = vst [vmem:[#allocation2 + $0x48] sm:$0xff] %v274
    %291 = vst [vmem:[#allocation2 + $0x50] sm:$0xff] %v275
    %292 = vst [vmem:[#allocation2 + $0x58] sm:$0xff] %v276
    %293 = vst [vmem:[#allocation2 + $0x60] sm:$0xff] %v277
    %294 = vst [vmem:[#allocation2 + $0x68] sm:$0xff] %v278
    %295 = vst [vmem:[#allocation2 + $0x70] sm:$0xff] %v279
    %296 = vst [vmem:[#allocation2 + $0x78] sm:$0xff] %v280
    // Predicated region
    $region26: #{tpu_custom_call.1} parent=1 // pred_check
      %p297 = pneg %p44
    $region27: #{tpu_custom_call.1} parent=1 // pred_check_branch
      %299 = sbr.rel (%p297) target = $region29
    $region28: #{tpu_custom_call.1} parent=1 // pred_region
      %v300 = vld [vmem:[#allocation2] sm:$0xff]
      %v301 = vld [vmem:[#allocation2 + $0x8] sm:$0xff]
      %v302 = vld [vmem:[#allocation2 + $0x10] sm:$0xff]
      %v303 = vld [vmem:[#allocation2 + $0x18] sm:$0xff]
      %v304 = vld [vmem:[#allocation2 + $0x20] sm:$0xff]
      %v305 = vld [vmem:[#allocation2 + $0x28] sm:$0xff]
      %v306 = vld [vmem:[#allocation2 + $0x30] sm:$0xff]
      %v307 = vld [vmem:[#allocation2 + $0x38] sm:$0xff]
      %v308 = vld [vmem:[#allocation2 + $0x40] sm:$0xff]
      %v309 = vld [vmem:[#allocation2 + $0x48] sm:$0xff]
      %v310 = vld [vmem:[#allocation2 + $0x50] sm:$0xff]
      %v311 = vld [vmem:[#allocation2 + $0x58] sm:$0xff]
      %v312 = vld [vmem:[#allocation2 + $0x60] sm:$0xff]
      %v313 = vld [vmem:[#allocation2 + $0x68] sm:$0xff]
      %v314 = vld [vmem:[#allocation2 + $0x70] sm:$0xff]
      %v315 = vld [vmem:[#allocation2 + $0x78] sm:$0xff]
      %v316 = vld [vmem:[%s2] sm:$0x1]
      %v318 = vlaneseq
      %v319 = vshrl.u32 %v318, 7
      %v320 = vsub.s32 0, %v319
      %v321 = vrot.slane %v316, %v320
      %v323 = vadd.f32 %v300, %v321
      %v324 = vadd.f32 %v301, %v321
      %v325 = vadd.f32 %v302, %v321
      %v326 = vadd.f32 %v303, %v321
      %v327 = vadd.f32 %v304, %v321
      %v328 = vadd.f32 %v305, %v321
      %v329 = vadd.f32 %v306, %v321
      %v330 = vadd.f32 %v307, %v321
      %v331 = vadd.f32 %v308, %v321
      %v332 = vadd.f32 %v309, %v321
      %v333 = vadd.f32 %v310, %v321
      %v334 = vadd.f32 %v311, %v321
      %v335 = vadd.f32 %v312, %v321
      %v336 = vadd.f32 %v313, %v321
      %v337 = vadd.f32 %v314, %v321
      %v338 = vadd.f32 %v315, %v321
      %339 = vst [vmem:[#allocation8] sm:$0xff] %v323
      %340 = vst [vmem:[#allocation8 + $0x8] sm:$0xff] %v324
      %341 = vst [vmem:[#allocation8 + $0x10] sm:$0xff] %v325
      %342 = vst [vmem:[#allocation8 + $0x18] sm:$0xff] %v326
      %343 = vst [vmem:[#allocation8 + $0x20] sm:$0xff] %v327
      %344 = vst [vmem:[#allocation8 + $0x28] sm:$0xff] %v328
      %345 = vst [vmem:[#allocation8 + $0x30] sm:$0xff] %v329
      %346 = vst [vmem:[#allocation8 + $0x38] sm:$0xff] %v330
      %347 = vst [vmem:[#allocation8 + $0x40] sm:$0xff] %v331
      %348 = vst [vmem:[#allocation8 + $0x48] sm:$0xff] %v332
      %349 = vst [vmem:[#allocation8 + $0x50] sm:$0xff] %v333
      %350 = vst [vmem:[#allocation8 + $0x58] sm:$0xff] %v334
      %351 = vst [vmem:[#allocation8 + $0x60] sm:$0xff] %v335
      %352 = vst [vmem:[#allocation8 + $0x68] sm:$0xff] %v336
      %353 = vst [vmem:[#allocation8 + $0x70] sm:$0xff] %v337
      %354 = vst [vmem:[#allocation8 + $0x78] sm:$0xff] %v338
    $region29: #{tpu_custom_call.1} parent=1 // pred_fallthru
      _
    // Predicated region
    $region30: #{tpu_custom_call.1} parent=1 // pred_check
      _
    $region31: #{tpu_custom_call.1} parent=1 // pred_check_branch
      %356 = sbr.rel (0) target = $region33
    $region32: #{tpu_custom_call.1} parent=1 // pred_region
      %s358 = ssub.s32 2048, 2048
      %359 = vsyncadd [#allocation5], %s358
      %s360 = sshll.u32 [#allocation8], 4
      %s361 = int_to_ptr.vmem [resolvable:$true] %s360
      %366 = dma.vmem_to_hbm [thread:$0]  %s361, 2048, %s3, [#allocation5], 128, 128, 8
    $region33: #{tpu_custom_call.1} parent=1 // pred_fallthru
      _
    // Predicated region
    $region34: #{tpu_custom_call.1} parent=1 // pred_check
      _
    $region35: #{tpu_custom_call.1} parent=1 // pred_check_branch
      %368 = sbr.rel (0) target = $region37
    $region36: #{tpu_custom_call.1} parent=1 // pred_region
      %369 = dma.done [#allocation5], 2048
    $region37: #{tpu_custom_call.1} parent=1 // pred_fallthru
      _
    %370 = vsyncpa [#allocation4], 1
    %371 = vsyncpa [#allocation7], 1
    %372 = vsyncpa [#allocation5], 1

</llo_original>
